<compile_context>
chip_gen: v6e
topology: v6e:2x2x1
jax: 0.10.0
libtpu: 0.0.40
codegen_flags: <defaults>
</compile_context>

<pallas_src>
import functools

import jax
import jax.numpy as jnp
from jax.experimental import pallas as pl
from jax.experimental.pallas import tpu as pltpu

LANE = 128


def _round_up(x, m):
    return ((x + m - 1) // m) * m


# -----------------------------------------------------------------------------
# Kernel: one column tile (tile_n batch rows on the lane axis) per grid step
# -----------------------------------------------------------------------------
def rgtan_kernel(n_layers,
                 x_ref, g_ref,
                 w_in_ref, b_in_ref,
                 w_g_ref, b_g_ref,
                 ln_g_ref, ln_b_ref,
                 w_fuse_h_ref, w_fuse_g_ref, b_fuse_ref,
                 w_heads_ref, b_heads_ref,
                 heads_out_ref):
    f32 = jnp.float32

    # input_proj: h^T = W_in @ x^T + b_in  -> (hidden, tile_n), f32 accumulate.
    h = jnp.dot(w_in_ref[...], x_ref[...], preferred_element_type=f32) + b_in_ref[...]

    # Hoist LayerNorm parameter loads out of the unrolled layer loop.
    ln_gamma = ln_g_ref[...]   # (hidden, n_layers)
    ln_beta = ln_b_ref[...]
    inv_hidden = 1.0 / h.shape[0]

    # Per-layer: conv skipped (blocks=None) -> ReLU -> LayerNorm -> dropout(id)
    for i in range(n_layers):
        h = jnp.maximum(h, 0.0)
        # Single-pass LayerNorm stats over the hidden (sublane) axis.
        mu = jnp.sum(h, axis=0, keepdims=True) * inv_hidden          # (1, tile_n)
        ex2 = jnp.sum(h * h, axis=0, keepdims=True) * inv_hidden     # (1, tile_n)
        var = ex2 - mu * mu
        h = ((h - mu) * jax.lax.rsqrt(var + 1e-5)
             * ln_gamma[:, i:i + 1] + ln_beta[:, i:i + 1])

    # graph_proj after the layer loop: shorter live range for h_graph.
    h_graph = (jnp.dot(w_g_ref[...], g_ref[...], preferred_element_type=f32)
               + b_g_ref[...])

    # fusion(concat([h, h_graph])) == W_fuse[:, :H] @ h^T + W_fuse[:, H:] @ h_g^T + b
    h_fused = (jnp.dot(w_fuse_h_ref[...], h, preferred_element_type=f32)
               + jnp.dot(w_fuse_g_ref[...], h_graph, preferred_element_type=f32)
               + b_fuse_ref[...])
    h_fused = jnp.maximum(h_fused, 0.0)

    # All four heads fused into one (head_rows, tile_n) lane-dense store.
    heads_out_ref[...] = (
        jnp.dot(w_heads_ref[...], h_fused, preferred_element_type=f32)
        + b_heads_ref[...])


# -----------------------------------------------------------------------------
# Wrapper
# -----------------------------------------------------------------------------
def lightweight_rgtan_forward(x, graph_features, params, n_layers, n_classes,
                              tile_n=1024):
    f32, bf16 = jnp.float32, jnp.bfloat16
    n, in_feats = x.shape
    graph_feats = graph_features.shape[1]
    hidden = params["w_in"].shape[1]

    # ---- batch tiling: batch rows live on the LANE axis ----------------------
    n_ceil = _round_up(n, LANE)
    tile_n = _round_up(max(LANE, min(tile_n, n_ceil)), LANE)
    if n_ceil >= 2 * LANE:
        # Keep >=2 grid steps so v7x megacore can shard rows across both TCs.
        tile_n = min(tile_n, _round_up(pl.cdiv(n_ceil, 2), LANE))
    n_pad = _round_up(n_ceil, tile_n)
    grid = (n_pad // tile_n,)

    # ---- transposed bf16 input streams ---------------------------------------
    x_t = jnp.pad(x.T.astype(bf16), ((0, 0), (0, n_pad - n)))
    g_t = jnp.pad(graph_features.T.astype(bf16), ((0, 0), (0, n_pad - n)))

    # ---- weights in the transposed-activation orientation --------------------
    # param dict stores Linear weights as [in, out] (PyTorch W^T); transpose
    # back to [out, in] so the kernel computes W @ h^T.
    w_in_t = params["w_in"].T.astype(bf16)          # (hidden, in_feats)
    w_g_t = params["w_g"].T.astype(bf16)            # (hidden, graph_feats)
    b_in_t = params["b_in"].T.astype(f32)           # (hidden, 1)
    b_g_t = params["b_g"].T.astype(f32)
    ln_g_t = params["ln_gamma"].T.astype(f32)       # (hidden, n_layers)
    ln_b_t = params["ln_beta"].T.astype(f32)
    w_fuse_h = params["w_fuse"][:hidden, :].T.astype(f32)   # (hidden, hidden)
    w_fuse_g = params["w_fuse"][hidden:, :].T.astype(f32)
    b_fuse_t = params["b_fuse"].T.astype(f32)

    # Fuse the four narrow heads: outputs stacked on sublanes, padded to 8k.
    head_total = n_classes + 2 + 2 + 2
    head_rows = _round_up(head_total, 8)
    w_heads = jnp.concatenate(
        [params["w_dec"].T, params["w_if"].T, params["w_sec"].T, params["w_im"].T],
        axis=0)
    b_heads = jnp.concatenate(
        [params["b_dec"].T, params["b_if"].T, params["b_sec"].T, params["b_im"].T],
        axis=0)
    w_heads = jnp.pad(w_heads, ((0, head_rows - head_total), (0, 0))).astype(f32)
    b_heads = jnp.pad(b_heads, ((0, head_rows - head_total), (0, 0))).astype(f32)

    inputs = (x_t, g_t,
              w_in_t, b_in_t, w_g_t, b_g_t,
              ln_g_t, ln_b_t,
              w_fuse_h, w_fuse_g, b_fuse_t,
              w_heads, b_heads)

    # Streamed tiles for x / g / out; everything else resident (constant index).
    in_specs = [
        pl.BlockSpec((in_feats, tile_n), lambda i: (0, i)),
        pl.BlockSpec((graph_feats, tile_n), lambda i: (0, i)),
    ] + [pl.BlockSpec(a.shape, lambda i: (0, 0)) for a in inputs[2:]]

    out_specs = pl.BlockSpec((head_rows, tile_n), lambda i: (0, i))
    out_shape = jax.ShapeDtypeStruct((head_rows, n_pad), f32)

    # Advisory cost estimate so XLA schedules the custom call sensibly.
    flops = 2 * n_pad * (in_feats * hidden + graph_feats * hidden
                         + 2 * hidden * hidden + hidden * head_rows)
    bytes_accessed = (sum(int(a.size) * a.dtype.itemsize for a in inputs)
                      + head_rows * n_pad * 4)
    cost = pl.CostEstimate(flops=flops,
                           transcendentals=n_pad * n_layers,
                           bytes_accessed=bytes_accessed)

    heads_t = pl.pallas_call(
        functools.partial(rgtan_kernel, n_layers),
        out_shape=out_shape,
        grid=grid,
        in_specs=in_specs,
        out_specs=out_specs,
        compiler_params=pltpu.CompilerParams(
            dimension_semantics=("parallel",),           # megacore on v7x
            vmem_limit_bytes=32 * 1024 * 1024),
        cost_estimate=cost,
    )(*inputs)

    o = n_classes
    return {
        "decline": heads_t[:o, :n].T,
        "insufficient_funds": heads_t[o:o + 2, :n].T,
        "security": heads_t[o + 2:o + 4, :n].T,
        "invalid_merchant": heads_t[o + 4:o + 6, :n].T,
    }


# -----------------------------------------------------------------------------
# Pure-JAX reference (same math, matching bf16 quantization of the projections)
# -----------------------------------------------------------------------------
def reference_forward(x, graph_features, params, n_layers):
    bf16, f32 = jnp.bfloat16, jnp.float32
    h = (jnp.dot(x.astype(bf16), params["w_in"].astype(bf16),
                 preferred_element_type=f32) + params["b_in"])
    h_graph = (jnp.dot(graph_features.astype(bf16), params["w_g"].astype(bf16),
                       preferred_element_type=f32) + params["b_g"])
    for i in range(n_layers):
        h = jnp.maximum(h, 0.0)
        g = params["ln_gamma"][i:i + 1, :]
        b = params["ln_beta"][i:i + 1, :]
        mu = jnp.mean(h, -1, keepdims=True)
        var = jnp.mean((h - mu) ** 2, -1, keepdims=True)
        h = (h - mu) * jax.lax.rsqrt(var + 1e-5) * g + b
    h_cat = jnp.concatenate([h, h_graph], axis=-1)
    h_fused = jnp.maximum(h_cat @ params["w_fuse"] + params["b_fuse"], 0.0)
    return {
        "decline": h_fused @ params["w_dec"] + params["b_dec"],
        "insufficient_funds": h_fused @ params["w_if"] + params["b_if"],
        "security": h_fused @ params["w_sec"] + params["b_sec"],
        "invalid_merchant": h_fused @ params["w_im"] + params["b_im"],
    }


# -----------------------------------------------------------------------------
# Main
# -----------------------------------------------------------------------------
if __name__ == "__main__":
    # Small, module-consistent shapes.
    N = 8             # number of nodes / batch rows
    IN_FEATS = 16
    GRAPH_FEATS = 8
    HIDDEN = 32
    N_LAYERS = 2
    N_CLASSES = 4

    key = jax.random.PRNGKey(0)
    ks = jax.random.split(key, 16)

    def lin(k, fan_in, fan_out):
        # deterministic synthetic init, stored as [in, out] (PyTorch W^T)
        return (jax.random.normal(k, (fan_in, fan_out), jnp.float32)
                * (1.0 / jnp.sqrt(fan_in)))

    params = {
        "w_in": lin(ks[0], IN_FEATS, HIDDEN),
        "b_in": jax.random.normal(ks[1], (1, HIDDEN), jnp.float32) * 0.01,
        "w_g": lin(ks[2], GRAPH_FEATS, HIDDEN),
        "b_g": jax.random.normal(ks[3], (1, HIDDEN), jnp.float32) * 0.01,
        # LayerNorm default init: weight=1, bias=0 (per nn.LayerNorm)
        "ln_gamma": jnp.ones((N_LAYERS, HIDDEN), jnp.float32),
        "ln_beta": jnp.zeros((N_LAYERS, HIDDEN), jnp.float32),
        "w_fuse": lin(ks[4], 2 * HIDDEN, HIDDEN),
        "b_fuse": jax.random.normal(ks[5], (1, HIDDEN), jnp.float32) * 0.01,
        "w_dec": lin(ks[6], HIDDEN, N_CLASSES),
        "b_dec": jax.random.normal(ks[7], (1, N_CLASSES), jnp.float32) * 0.01,
        "w_if": lin(ks[8], HIDDEN, 2),
        "b_if": jax.random.normal(ks[9], (1, 2), jnp.float32) * 0.01,
        "w_sec": lin(ks[10], HIDDEN, 2),
        "b_sec": jax.random.normal(ks[11], (1, 2), jnp.float32) * 0.01,
        "w_im": lin(ks[12], HIDDEN, 2),
        "b_im": jax.random.normal(ks[13], (1, 2), jnp.float32) * 0.01,
    }

    x = jax.random.normal(ks[14], (N, IN_FEATS), jnp.float32)
    graph_features = jax.random.normal(ks[15], (N, GRAPH_FEATS), jnp.float32)

    outs = lightweight_rgtan_forward(x, graph_features, params,
                                     N_LAYERS, N_CLASSES)
    jax.block_until_ready(outs)

    ref = reference_forward(x, graph_features, params, N_LAYERS)
    for name in outs:
        assert outs[name].shape == ref[name].shape, name
        err = jnp.max(jnp.abs(outs[name] - ref[name]))
        assert err < 1e-3, (name, float(err))

    print("KERNEL_OK")
</pallas_src>

<mosaic_0001>
module attributes {stable_mosaic.version = 11 : i64} {
  func.func @rgtan_kernel(%arg0: i32, %arg1: memref<16x128xbf16, #tpu.memory_space<vmem>>, %arg2: memref<8x128xbf16, #tpu.memory_space<vmem>>, %arg3: memref<32x16xbf16, #tpu.memory_space<vmem>>, %arg4: memref<32x1xf32, #tpu.memory_space<vmem>>, %arg5: memref<32x8xbf16, #tpu.memory_space<vmem>>, %arg6: memref<32x1xf32, #tpu.memory_space<vmem>>, %arg7: memref<32x2xf32, #tpu.memory_space<vmem>>, %arg8: memref<32x2xf32, #tpu.memory_space<vmem>>, %arg9: memref<32x32xf32, #tpu.memory_space<vmem>>, %arg10: memref<32x32xf32, #tpu.memory_space<vmem>>, %arg11: memref<32x1xf32, #tpu.memory_space<vmem>>, %arg12: memref<16x32xf32, #tpu.memory_space<vmem>>, %arg13: memref<16x1xf32, #tpu.memory_space<vmem>>, %arg14: memref<16x128xf32, #tpu.memory_space<vmem>>) attributes {dimension_semantics = [#tpu.dimension_semantics<parallel>], iteration_bounds = array<i64: 1>, scalar_prefetch = 0 : i64, scratch_operands = 0 : i64, tpu.core_type = #tpu.core_type<tc>, window_params = [{transform_indices = @transform_0, window_bounds = array<i64: 16, 128>}, {transform_indices = @transform_1, window_bounds = array<i64: 8, 128>}, {pipeline_mode = #tpu.pipeline_mode<synchronous>, transform_indices = @transform_2, window_bounds = array<i64: 32, 16>}, {pipeline_mode = #tpu.pipeline_mode<synchronous>, transform_indices = @transform_3, window_bounds = array<i64: 32, 1>}, {pipeline_mode = #tpu.pipeline_mode<synchronous>, transform_indices = @transform_4, window_bounds = array<i64: 32, 8>}, {pipeline_mode = #tpu.pipeline_mode<synchronous>, transform_indices = @transform_5, window_bounds = array<i64: 32, 1>}, {pipeline_mode = #tpu.pipeline_mode<synchronous>, transform_indices = @transform_6, window_bounds = array<i64: 32, 2>}, {pipeline_mode = #tpu.pipeline_mode<synchronous>, transform_indices = @transform_7, window_bounds = array<i64: 32, 2>}, {pipeline_mode = #tpu.pipeline_mode<synchronous>, transform_indices = @transform_8, window_bounds = array<i64: 32, 32>}, {pipeline_mode = #tpu.pipeline_mode<synchronous>, transform_indices = @transform_9, window_bounds = array<i64: 32, 32>}, {pipeline_mode = #tpu.pipeline_mode<synchronous>, transform_indices = @transform_10, window_bounds = array<i64: 32, 1>}, {pipeline_mode = #tpu.pipeline_mode<synchronous>, transform_indices = @transform_11, window_bounds = array<i64: 16, 32>}, {pipeline_mode = #tpu.pipeline_mode<synchronous>, transform_indices = @transform_12, window_bounds = array<i64: 16, 1>}, {transform_indices = @transform_13, window_bounds = array<i64: 16, 128>}]} {
    %c0 = arith.constant 0 : index
    %c0_0 = arith.constant 0 : index
    %0 = vector.load %arg3[%c0, %c0_0] : memref<32x16xbf16, #tpu.memory_space<vmem>>, vector<32x16xbf16>
    %c0_1 = arith.constant 0 : index
    %c0_2 = arith.constant 0 : index
    %1 = vector.load %arg1[%c0_1, %c0_2] : memref<16x128xbf16, #tpu.memory_space<vmem>>, vector<16x128xbf16>
    %cst = arith.constant dense<0.000000e+00> : vector<32x128xf32>
    %2 = tpu.matmul %0, %1, %cst {dimension_numbers = #tpu.dot_dimension_numbers<[1], [0], [0], [1], [0, 0, 1, 1], [], []>} : vector<32x16xbf16>, vector<16x128xbf16>, vector<32x128xf32> -> vector<32x128xf32>
    %c0_3 = arith.constant 0 : index
    %c0_4 = arith.constant 0 : index
    %3 = vector.load %arg4[%c0_3, %c0_4] : memref<32x1xf32, #tpu.memory_space<vmem>>, vector<32x1xf32>
    %4 = vector.broadcast %3 : vector<32x1xf32> to vector<32x128xf32>
    %5 = arith.addf %2, %4 : vector<32x128xf32>
    %c0_5 = arith.constant 0 : index
    %c0_6 = arith.constant 0 : index
    %6 = vector.load %arg7[%c0_5, %c0_6] : memref<32x2xf32, #tpu.memory_space<vmem>>, vector<32x2xf32>
    %c0_7 = arith.constant 0 : index
    %c0_8 = arith.constant 0 : index
    %7 = vector.load %arg8[%c0_7, %c0_8] : memref<32x2xf32, #tpu.memory_space<vmem>>, vector<32x2xf32>
    %cst_9 = arith.constant 0.000000e+00 : f32
    %8 = vector.broadcast %cst_9 : f32 to vector<32x128xf32>
    %9 = arith.maximumf %5, %8 : vector<32x128xf32>
    %cst_10 = arith.constant dense<0.000000e+00> : vector<128xf32>
    %10 = vector.multi_reduction <add>, %9, %cst_10 [0] : vector<32x128xf32> to vector<128xf32>
    %11 = vector.shape_cast %10 : vector<128xf32> to vector<1x128xf32>
    %cst_11 = arith.constant 3.125000e-02 : f32
    %12 = vector.broadcast %cst_11 : f32 to vector<1x128xf32>
    %13 = arith.mulf %11, %12 : vector<1x128xf32>
    %14 = arith.mulf %9, %9 : vector<32x128xf32>
    %cst_12 = arith.constant dense<0.000000e+00> : vector<128xf32>
    %15 = vector.multi_reduction <add>, %14, %cst_12 [0] : vector<32x128xf32> to vector<128xf32>
    %16 = vector.shape_cast %15 : vector<128xf32> to vector<1x128xf32>
    %cst_13 = arith.constant 3.125000e-02 : f32
    %17 = vector.broadcast %cst_13 : f32 to vector<1x128xf32>
    %18 = arith.mulf %16, %17 : vector<1x128xf32>
    %19 = arith.mulf %13, %13 : vector<1x128xf32>
    %20 = arith.subf %18, %19 : vector<1x128xf32>
    %21 = vector.broadcast %13 : vector<1x128xf32> to vector<32x128xf32>
    %22 = arith.subf %9, %21 : vector<32x128xf32>
    %cst_14 = arith.constant 9.99999974E-6 : f32
    %23 = vector.broadcast %cst_14 : f32 to vector<1x128xf32>
    %24 = arith.addf %20, %23 : vector<1x128xf32>
    %25 = math.rsqrt %24 : vector<1x128xf32>
    %26 = vector.broadcast %25 : vector<1x128xf32> to vector<32x128xf32>
    %27 = arith.mulf %22, %26 : vector<32x128xf32>
    %28 = vector.extract_strided_slice %6 {offsets = [0, 0], sizes = [32, 1], strides = [1, 1]} : vector<32x2xf32> to vector<32x1xf32>
    %29 = vector.broadcast %28 : vector<32x1xf32> to vector<32x128xf32>
    %30 = arith.mulf %27, %29 : vector<32x128xf32>
    %31 = vector.extract_strided_slice %7 {offsets = [0, 0], sizes = [32, 1], strides = [1, 1]} : vector<32x2xf32> to vector<32x1xf32>
    %32 = vector.broadcast %31 : vector<32x1xf32> to vector<32x128xf32>
    %33 = arith.addf %30, %32 : vector<32x128xf32>
    %cst_15 = arith.constant 0.000000e+00 : f32
    %34 = vector.broadcast %cst_15 : f32 to vector<32x128xf32>
    %35 = arith.maximumf %33, %34 : vector<32x128xf32>
    %cst_16 = arith.constant dense<0.000000e+00> : vector<128xf32>
    %36 = vector.multi_reduction <add>, %35, %cst_16 [0] : vector<32x128xf32> to vector<128xf32>
    %37 = vector.shape_cast %36 : vector<128xf32> to vector<1x128xf32>
    %cst_17 = arith.constant 3.125000e-02 : f32
    %38 = vector.broadcast %cst_17 : f32 to vector<1x128xf32>
    %39 = arith.mulf %37, %38 : vector<1x128xf32>
    %40 = arith.mulf %35, %35 : vector<32x128xf32>
    %cst_18 = arith.constant dense<0.000000e+00> : vector<128xf32>
    %41 = vector.multi_reduction <add>, %40, %cst_18 [0] : vector<32x128xf32> to vector<128xf32>
    %42 = vector.shape_cast %41 : vector<128xf32> to vector<1x128xf32>
    %cst_19 = arith.constant 3.125000e-02 : f32
    %43 = vector.broadcast %cst_19 : f32 to vector<1x128xf32>
    %44 = arith.mulf %42, %43 : vector<1x128xf32>
    %45 = arith.mulf %39, %39 : vector<1x128xf32>
    %46 = arith.subf %44, %45 : vector<1x128xf32>
    %47 = vector.broadcast %39 : vector<1x128xf32> to vector<32x128xf32>
    %48 = arith.subf %35, %47 : vector<32x128xf32>
    %cst_20 = arith.constant 9.99999974E-6 : f32
    %49 = vector.broadcast %cst_20 : f32 to vector<1x128xf32>
    %50 = arith.addf %46, %49 : vector<1x128xf32>
    %51 = math.rsqrt %50 : vector<1x128xf32>
    %52 = vector.broadcast %51 : vector<1x128xf32> to vector<32x128xf32>
    %53 = arith.mulf %48, %52 : vector<32x128xf32>
    %54 = vector.extract_strided_slice %6 {offsets = [0, 1], sizes = [32, 1], strides = [1, 1]} : vector<32x2xf32> to vector<32x1xf32>
    %55 = vector.broadcast %54 : vector<32x1xf32> to vector<32x128xf32>
    %56 = arith.mulf %53, %55 : vector<32x128xf32>
    %57 = vector.extract_strided_slice %7 {offsets = [0, 1], sizes = [32, 1], strides = [1, 1]} : vector<32x2xf32> to vector<32x1xf32>
    %58 = vector.broadcast %57 : vector<32x1xf32> to vector<32x128xf32>
    %59 = arith.addf %56, %58 : vector<32x128xf32>
    %c0_21 = arith.constant 0 : index
    %c0_22 = arith.constant 0 : index
    %60 = vector.load %arg5[%c0_21, %c0_22] : memref<32x8xbf16, #tpu.memory_space<vmem>>, vector<32x8xbf16>
    %c0_23 = arith.constant 0 : index
    %c0_24 = arith.constant 0 : index
    %61 = vector.load %arg2[%c0_23, %c0_24] : memref<8x128xbf16, #tpu.memory_space<vmem>>, vector<8x128xbf16>
    %cst_25 = arith.constant dense<0.000000e+00> : vector<32x128xf32>
    %62 = tpu.matmul %60, %61, %cst_25 {dimension_numbers = #tpu.dot_dimension_numbers<[1], [0], [0], [1], [0, 0, 1, 1], [], []>} : vector<32x8xbf16>, vector<8x128xbf16>, vector<32x128xf32> -> vector<32x128xf32>
    %c0_26 = arith.constant 0 : index
    %c0_27 = arith.constant 0 : index
    %63 = vector.load %arg6[%c0_26, %c0_27] : memref<32x1xf32, #tpu.memory_space<vmem>>, vector<32x1xf32>
    %64 = vector.broadcast %63 : vector<32x1xf32> to vector<32x128xf32>
    %65 = arith.addf %62, %64 : vector<32x128xf32>
    %c0_28 = arith.constant 0 : index
    %c0_29 = arith.constant 0 : index
    %66 = vector.load %arg9[%c0_28, %c0_29] : memref<32x32xf32, #tpu.memory_space<vmem>>, vector<32x32xf32>
    %cst_30 = arith.constant dense<0.000000e+00> : vector<32x128xf32>
    %67 = tpu.matmul %66, %59, %cst_30 {dimension_numbers = #tpu.dot_dimension_numbers<[1], [0], [0], [1], [0, 0, 1, 1], [], []>} : vector<32x32xf32>, vector<32x128xf32>, vector<32x128xf32> -> vector<32x128xf32>
    %c0_31 = arith.constant 0 : index
    %c0_32 = arith.constant 0 : index
    %68 = vector.load %arg10[%c0_31, %c0_32] : memref<32x32xf32, #tpu.memory_space<vmem>>, vector<32x32xf32>
    %cst_33 = arith.constant dense<0.000000e+00> : vector<32x128xf32>
    %69 = tpu.matmul %68, %65, %cst_33 {dimension_numbers = #tpu.dot_dimension_numbers<[1], [0], [0], [1], [0, 0, 1, 1], [], []>} : vector<32x32xf32>, vector<32x128xf32>, vector<32x128xf32> -> vector<32x128xf32>
    %70 = arith.addf %67, %69 : vector<32x128xf32>
    %c0_34 = arith.constant 0 : index
    %c0_35 = arith.constant 0 : index
    %71 = vector.load %arg11[%c0_34, %c0_35] : memref<32x1xf32, #tpu.memory_space<vmem>>, vector<32x1xf32>
    %72 = vector.broadcast %71 : vector<32x1xf32> to vector<32x128xf32>
    %73 = arith.addf %70, %72 : vector<32x128xf32>
    %cst_36 = arith.constant 0.000000e+00 : f32
    %74 = vector.broadcast %cst_36 : f32 to vector<32x128xf32>
    %75 = arith.maximumf %73, %74 : vector<32x128xf32>
    %c0_37 = arith.constant 0 : index
    %c0_38 = arith.constant 0 : index
    %76 = vector.load %arg12[%c0_37, %c0_38] : memref<16x32xf32, #tpu.memory_space<vmem>>, vector<16x32xf32>
    %cst_39 = arith.constant dense<0.000000e+00> : vector<16x128xf32>
    %77 = tpu.matmul %76, %75, %cst_39 {dimension_numbers = #tpu.dot_dimension_numbers<[1], [0], [0], [1], [0, 0, 1, 1], [], []>} : vector<16x32xf32>, vector<32x128xf32>, vector<16x128xf32> -> vector<16x128xf32>
    %c0_40 = arith.constant 0 : index
    %c0_41 = arith.constant 0 : index
    %78 = vector.load %arg13[%c0_40, %c0_41] : memref<16x1xf32, #tpu.memory_space<vmem>>, vector<16x1xf32>
    %79 = vector.broadcast %78 : vector<16x1xf32> to vector<16x128xf32>
    %80 = arith.addf %77, %79 : vector<16x128xf32>
    %c0_42 = arith.constant 0 : index
    %c0_43 = arith.constant 0 : index
    %81 = vector.load %arg14[%c0_42, %c0_43] : memref<16x128xf32, #tpu.memory_space<vmem>>, vector<16x128xf32>
    tpu.vector_store %arg14[%c0_42, %c0_43], %80 {strides = array<i32>} : memref<16x128xf32, #tpu.memory_space<vmem>>, vector<16x128xf32>,
    return
  }
  func.func @transform_0(%arg0: i32) -> (i32, i32) {
    %c0_i32 = arith.constant 0 : i32
    %c0_i32_0 = arith.constant 0 : i32
    return %c0_i32, %arg0 : i32, i32
  }
  func.func @transform_1(%arg0: i32) -> (i32, i32) {
    %c0_i32 = arith.constant 0 : i32
    %c0_i32_0 = arith.constant 0 : i32
    return %c0_i32, %arg0 : i32, i32
  }
  func.func @transform_2(%arg0: i32) -> (i32, i32) {
    %c0_i32 = arith.constant 0 : i32
    %c0_i32_0 = arith.constant 0 : i32
    %c0_i32_1 = arith.constant 0 : i32
    return %c0_i32, %c0_i32_0 : i32, i32
  }
  func.func @transform_3(%arg0: i32) -> (i32, i32) {
    %c0_i32 = arith.constant 0 : i32
    %c0_i32_0 = arith.constant 0 : i32
    %c0_i32_1 = arith.constant 0 : i32
    return %c0_i32, %c0_i32_0 : i32, i32
  }
  func.func @transform_4(%arg0: i32) -> (i32, i32) {
    %c0_i32 = arith.constant 0 : i32
    %c0_i32_0 = arith.constant 0 : i32
    %c0_i32_1 = arith.constant 0 : i32
    return %c0_i32, %c0_i32_0 : i32, i32
  }
  func.func @transform_5(%arg0: i32) -> (i32, i32) {
    %c0_i32 = arith.constant 0 : i32
    %c0_i32_0 = arith.constant 0 : i32
    %c0_i32_1 = arith.constant 0 : i32
    return %c0_i32, %c0_i32_0 : i32, i32
  }
  func.func @transform_6(%arg0: i32) -> (i32, i32) {
    %c0_i32 = arith.constant 0 : i32
    %c0_i32_0 = arith.constant 0 : i32
    %c0_i32_1 = arith.constant 0 : i32
    return %c0_i32, %c0_i32_0 : i32, i32
  }
  func.func @transform_7(%arg0: i32) -> (i32, i32) {
    %c0_i32 = arith.constant 0 : i32
    %c0_i32_0 = arith.constant 0 : i32
    %c0_i32_1 = arith.constant 0 : i32
    return %c0_i32, %c0_i32_0 : i32, i32
  }
  func.func @transform_8(%arg0: i32) -> (i32, i32) {
    %c0_i32 = arith.constant 0 : i32
    %c0_i32_0 = arith.constant 0 : i32
    %c0_i32_1 = arith.constant 0 : i32
    return %c0_i32, %c0_i32_0 : i32, i32
  }
  func.func @transform_9(%arg0: i32) -> (i32, i32) {
    %c0_i32 = arith.constant 0 : i32
    %c0_i32_0 = arith.constant 0 : i32
    %c0_i32_1 = arith.constant 0 : i32
    return %c0_i32, %c0_i32_0 : i32, i32
  }
  func.func @transform_10(%arg0: i32) -> (i32, i32) {
    %c0_i32 = arith.constant 0 : i32
    %c0_i32_0 = arith.constant 0 : i32
    %c0_i32_1 = arith.constant 0 : i32
    return %c0_i32, %c0_i32_0 : i32, i32
  }
  func.func @transform_11(%arg0: i32) -> (i32, i32) {
    %c0_i32 = arith.constant 0 : i32
    %c0_i32_0 = arith.constant 0 : i32
    %c0_i32_1 = arith.constant 0 : i32
    return %c0_i32, %c0_i32_0 : i32, i32
  }
  func.func @transform_12(%arg0: i32) -> (i32, i32) {
    %c0_i32 = arith.constant 0 : i32
    %c0_i32_0 = arith.constant 0 : i32
    %c0_i32_1 = arith.constant 0 : i32
    return %c0_i32, %c0_i32_0 : i32, i32
  }
  func.func @transform_13(%arg0: i32) -> (i32, i32) {
    %c0_i32 = arith.constant 0 : i32
    %c0_i32_0 = arith.constant 0 : i32
    return %c0_i32, %arg0 : i32, i32
  }
}

</mosaic_0001>

<llo_original>
// kernel: tpu_custom_call.1
$region0: #{tpu_custom_call.1}
  #allocation0 [shape = 'u32[]', space=smem, size = 0x4, offset = 0x4, fixed_abs, tag = 'smem constant byte address 0x4 - core index']
  #allocation1 [shape = 'u32[144,128]{1,0:T(1,128)}', space=vmem, size = 0x12000, scoped, tag = 'internal scratch']
  %s0 = inlined_call_operand.vmem [shape: bf16[16,128], index: 0, kind: input, shape index: {}]
  %s1 = inlined_call_operand.vmem [shape: bf16[8,128], index: 1, kind: input, shape index: {}]
  %s2 = inlined_call_operand.vmem [shape: bf16[32,16], index: 2, kind: input, shape index: {}]
  %s3 = inlined_call_operand.vmem [shape: f32[32,1], index: 3, kind: input, shape index: {}]
  %s4 = inlined_call_operand.vmem [shape: bf16[32,8], index: 4, kind: input, shape index: {}]
  %s5 = inlined_call_operand.vmem [shape: f32[32,1], index: 5, kind: input, shape index: {}]
  %s6 = inlined_call_operand.vmem [shape: f32[32,2], index: 6, kind: input, shape index: {}]
  %s7 = inlined_call_operand.vmem [shape: f32[32,2], index: 7, kind: input, shape index: {}]
  %s8 = inlined_call_operand.vmem [shape: f32[32,32], index: 8, kind: input, shape index: {}]
  %s9 = inlined_call_operand.vmem [shape: f32[32,32], index: 9, kind: input, shape index: {}]
  %s10 = inlined_call_operand.vmem [shape: f32[32,1], index: 10, kind: input, shape index: {}]
  %s11 = inlined_call_operand.vmem [shape: f32[16,32], index: 11, kind: input, shape index: {}]
  %s12 = inlined_call_operand.vmem [shape: f32[16,1], index: 12, kind: input, shape index: {}]
  %s13 = inlined_call_operand.hbm [shape: f32[16,128], index: 13, kind: output, shape index: {}]
  %s14 = sld [smem:[#allocation0]]
  $region62: #{tpu_custom_call.1} parent=0
    _
  %s16 = ssub.s32 1, %s14
  %s17 = scalar_select 0, %s16, %s14
  $region1: #{tpu_custom_call.1} parent=0
    #allocation2 [shape = 'u8[8192]{0}', space=vmem, size = 0x2000, scoped, tag = 'output window, operand 0, single buffered']
    #allocation3 [shape = 's32[1]{0}', space=sflag, size = 0x4, scoped, tag = 'scoped memory for tpu_custom_call.1']
    %18 = vsyncpa [#allocation3], 0
    // Predicated region
    $region2: #{tpu_custom_call.1} parent=1 // pred_check
      _
    $region3: #{tpu_custom_call.1} parent=1 // pred_check_branch
      %20 = sbr.rel (0) target = $region5
    $region4: #{tpu_custom_call.1} parent=1 // pred_region
      _
    $region5: #{tpu_custom_call.1} parent=1 // pred_fallthru
      _
    // Predicated region
    $region6: #{tpu_custom_call.1} parent=1 // pred_check
      _
    $region7: #{tpu_custom_call.1} parent=1 // pred_check_branch
      %22 = sbr.rel (0) target = $region9
    $region8: #{tpu_custom_call.1} parent=1 // pred_region
      _
    $region9: #{tpu_custom_call.1} parent=1 // pred_fallthru
      _
    // Predicated region
    $region10: #{tpu_custom_call.1} parent=1 // pred_check
      _
    $region11: #{tpu_custom_call.1} parent=1 // pred_check_branch
      %24 = sbr.rel (0) target = $region13
    $region12: #{tpu_custom_call.1} parent=1 // pred_region
      _
    $region13: #{tpu_custom_call.1} parent=1 // pred_fallthru
      _
    // Predicated region
    $region14: #{tpu_custom_call.1} parent=1 // pred_check
      _
    $region15: #{tpu_custom_call.1} parent=1 // pred_check_branch
      %26 = sbr.rel (0) target = $region17
    $region16: #{tpu_custom_call.1} parent=1 // pred_region
      _
    $region17: #{tpu_custom_call.1} parent=1 // pred_fallthru
      _
    // Predicated region
    $region18: #{tpu_custom_call.1} parent=1 // pred_check
      _
    $region19: #{tpu_custom_call.1} parent=1 // pred_check_branch
      %28 = sbr.rel (0) target = $region21
    $region20: #{tpu_custom_call.1} parent=1 // pred_region
      _
    $region21: #{tpu_custom_call.1} parent=1 // pred_fallthru
      _
    // Predicated region
    $region22: #{tpu_custom_call.1} parent=1 // pred_check
      _
    $region23: #{tpu_custom_call.1} parent=1 // pred_check_branch
      %30 = sbr.rel (0) target = $region25
    $region24: #{tpu_custom_call.1} parent=1 // pred_region
      _
    $region25: #{tpu_custom_call.1} parent=1 // pred_fallthru
      _
    // Predicated region
    $region26: #{tpu_custom_call.1} parent=1 // pred_check
      _
    $region27: #{tpu_custom_call.1} parent=1 // pred_check_branch
      %32 = sbr.rel (0) target = $region29
    $region28: #{tpu_custom_call.1} parent=1 // pred_region
      _
    $region29: #{tpu_custom_call.1} parent=1 // pred_fallthru
      _
    // Predicated region
    $region30: #{tpu_custom_call.1} parent=1 // pred_check
      _
    $region31: #{tpu_custom_call.1} parent=1 // pred_check_branch
      %34 = sbr.rel (0) target = $region33
    $region32: #{tpu_custom_call.1} parent=1 // pred_region
      _
    $region33: #{tpu_custom_call.1} parent=1 // pred_fallthru
      _
    // Predicated region
    $region34: #{tpu_custom_call.1} parent=1 // pred_check
      _
    $region35: #{tpu_custom_call.1} parent=1 // pred_check_branch
      %36 = sbr.rel (0) target = $region37
    $region36: #{tpu_custom_call.1} parent=1 // pred_region
      _
    $region37: #{tpu_custom_call.1} parent=1 // pred_fallthru
      _
    // Predicated region
    $region38: #{tpu_custom_call.1} parent=1 // pred_check
      _
    $region39: #{tpu_custom_call.1} parent=1 // pred_check_branch
      %38 = sbr.rel (0) target = $region41
    $region40: #{tpu_custom_call.1} parent=1 // pred_region
      _
    $region41: #{tpu_custom_call.1} parent=1 // pred_fallthru
      _
    // Predicated region
    $region42: #{tpu_custom_call.1} parent=1 // pred_check
      _
    $region43: #{tpu_custom_call.1} parent=1 // pred_check_branch
      %40 = sbr.rel (0) target = $region45
    $region44: #{tpu_custom_call.1} parent=1 // pred_region
      _
    $region45: #{tpu_custom_call.1} parent=1 // pred_fallthru
      _
    // Predicated region
    $region46: #{tpu_custom_call.1} parent=1 // pred_check
      _
    $region47: #{tpu_custom_call.1} parent=1 // pred_check_branch
      %42 = sbr.rel (0) target = $region49
    $region48: #{tpu_custom_call.1} parent=1 // pred_region
      _
    $region49: #{tpu_custom_call.1} parent=1 // pred_fallthru
      _
    // Predicated region
    $region50: #{tpu_custom_call.1} parent=1 // pred_check
      _
    $region51: #{tpu_custom_call.1} parent=1 // pred_check_branch
      %44 = sbr.rel (0) target = $region53
    $region52: #{tpu_custom_call.1} parent=1 // pred_region
      _
    $region53: #{tpu_custom_call.1} parent=1 // pred_fallthru
      _
    %v46 = vld [vmem:[%s2] sm:$0xf]
    %v47 = vld [vmem:[%s2 + $0x4] sm:$0xf]
    %v48 = vld [vmem:[%s2 + $0x8] sm:$0xf]
    %v49 = vld [vmem:[%s2 + $0xc] sm:$0xf]
    %v50 = vld [vmem:[%s0] sm:$0xf]
    %v51 = vld [vmem:[%s0 + $0x4] sm:$0xf]
    %v52 = vld [vmem:[%s3] sm:$0xff]
    %v53 = vld [vmem:[%s3 + $0x8] sm:$0xff]
    %v54 = vld [vmem:[%s3 + $0x10] sm:$0xff]
    %v55 = vld [vmem:[%s3 + $0x18] sm:$0xff]
    %57 = vset.pattern.permute.xlu0 0
    %58 = vperm.xlu0 %57, %v52
    %v59 = vpop.permute.xlu0 %58
    %62 = vset.pattern.permute.xlu0 0
    %63 = vperm.xlu0 %62, %v53
    %v64 = vpop.permute.xlu0 %63
    %67 = vset.pattern.permute.xlu0 0
    %68 = vperm.xlu0 %67, %v54
    %v69 = vpop.permute.xlu0 %68
    %72 = vset.pattern.permute.xlu0 0
    %73 = vperm.xlu0 %72, %v55
    %v74 = vpop.permute.xlu0 %73
    %v80 = vunpack.c.l.b16 %v46
    %v81 = vunpack.c.l.b16 %v47
    %v82 = vunpack.c.l.b16 %v48
    %v83 = vunpack.c.l.b16 %v49
    %v84 = vpack.c.b16 %v81, %v80
    %v85 = vpack.c.b16 %v83, %v82
    %v88 = vunpack.c.l.b16 %v50
    %v89 = vunpack.c.l.b16 %v51
    %v90 = vpack.c.b16 %v89, %v88
    %vm92 = vcmask 130048
    %v94 = vsel %vm92, %v84, 0
    %v97 = vsel %vm92, %v85, 0
    %99 = vmatprep.subr.bf16.mxu0 0
    %100 = vmatpush1.bf16.msra.mxu0 0
    %101 = vmatprep.subr.bf16.mxu0 0
    %102 = vmatpush1.bf16.msra.mxu0 0
    %103 = vmatprep.subr.bf16.mxu0 0
    %104 = vmatpush1.bf16.msra.mxu0 0
    %105 = vmatprep.subr.bf16.mxu0 0
    %106 = vmatpush1.bf16.msra.mxu0 0
    %107 = vmatprep.subr.bf16.mxu0 0
    %108 = vmatpush1.bf16.msra.mxu0 0
    %109 = vmatprep.subr.bf16.mxu0 0
    %110 = vmatpush1.bf16.msra.mxu0 0
    %111 = vmatprep.subr.bf16.mxu0 0
    %112 = vmatpush1.bf16.msra.mxu0 0
    %113 = vmatprep.subr.bf16.mxu0 0
    %114 = vmatpush1.bf16.msra.mxu0 %v90
    %115 = vmatprep.subr.bf16.mxu0 0
    %116 = vmatpush2.bf16.msra.mxu0 0
    %117 = vmatprep.subr.bf16.mxu0 0
    %118 = vmatpush2.bf16.msra.mxu0 0
    %119 = vmatprep.subr.bf16.mxu0 0
    %120 = vmatpush2.bf16.msra.mxu0 0
    %121 = vmatprep.subr.bf16.mxu0 0
    %122 = vmatpush2.bf16.msra.mxu0 0
    %123 = vmatprep.subr.bf16.mxu0 0
    %124 = vmatpush2.bf16.msra.mxu0 0
    %125 = vmatprep.subr.bf16.mxu0 0
    %126 = vmatpush2.bf16.msra.mxu0 0
    %127 = vmatprep.subr.bf16.mxu0 0
    %128 = vmatpush2.bf16.msra.mxu0 0
    %129 = vmatprep.subr.bf16.mxu0 0
    %130 = vmatpush2.bf16.msra.mxu0 0
    %131 = vmatprep.mubr.bf16.mxu0 0
    %132 = vmatmul.mubr.bf16.gmra.mxu0 %v94
    %v133 = vpop.f32.mrf.mxu0
    %v134 = vadd.f32 %v59, %v133
    %v135 = vpop.f32.mrf.mxu0
    %v136 = vpop.f32.mrf.mxu0
    %v137 = vadd.f32 %v64, %v136
    %v138 = vpop.f32.mrf.mxu0
    %139 = vmatprep.mubr.bf16.mxu0 0
    %140 = vmatmul.mubr.bf16.gmra.mxu0 %v97
    %v141 = vpop.f32.mrf.mxu0
    %v142 = vadd.f32 %v69, %v141
    %v143 = vpop.f32.mrf.mxu0
    %v144 = vpop.f32.mrf.mxu0
    %v145 = vadd.f32 %v74, %v144
    %v146 = vpop.f32.mrf.mxu0
    %147 = vdwg.mxu0
    %v148 = vld [vmem:[%s6] sm:$0xff]
    %v149 = vld [vmem:[%s6 + $0x8] sm:$0xff]
    %v150 = vld [vmem:[%s6 + $0x10] sm:$0xff]
    %v151 = vld [vmem:[%s6 + $0x18] sm:$0xff]
    %v152 = vld [vmem:[%s7] sm:$0xff]
    %v153 = vld [vmem:[%s7 + $0x8] sm:$0xff]
    %v154 = vld [vmem:[%s7 + $0x10] sm:$0xff]
    %v155 = vld [vmem:[%s7 + $0x18] sm:$0xff]
    %v156 = vmax.f32 %v134, 0.0
    %v157 = vmax.f32 %v137, 0.0
    %v158 = vmax.f32 %v142, 0.0
    %v159 = vmax.f32 %v145, 0.0
    %v160 = vadd.f32 %v156, %v157
    %v161 = vadd.f32 %v160, %v158
    %v162 = vadd.f32 %v161, %v159
    %v163 = vrot.slane %v162, 4
    %v164 = vadd.f32 %v162, %v163
    %v165 = vrot.slane %v164, 2
    %v166 = vadd.f32 %v164, %v165
    %v167 = vrot.slane %v166, 1
    %v168 = vadd.f32 %v166, %v167
    %v169 = vmul.f32 %v168, 0.03125
    %v170 = vmul.f32 %v156, %v156
    %v171 = vmul.f32 %v157, %v157
    %v172 = vmul.f32 %v158, %v158
    %v173 = vmul.f32 %v159, %v159
    %v174 = vadd.f32 %v170, %v171
    %v175 = vadd.f32 %v174, %v172
    %v176 = vadd.f32 %v175, %v173
    %v177 = vrot.slane %v176, 4
    %v178 = vadd.f32 %v176, %v177
    %v179 = vrot.slane %v178, 2
    %v180 = vadd.f32 %v178, %v179
    %v181 = vrot.slane %v180, 1
    %v182 = vadd.f32 %v180, %v181
    %v183 = vmul.f32 %v182, 0.03125
    %v184 = vmul.f32 %v169, %v169
    %v185 = vsub.f32 %v183, %v184
    %v186 = vsub.f32 %v156, %v169
    %v187 = vsub.f32 %v157, %v169
    %v188 = vsub.f32 %v158, %v169
    %v189 = vsub.f32 %v159, %v169
    %v190 = vadd.f32 %v185, 1e-05
    %v191 = vrsqrt.pop %v190
    %v192 = vmul.f32 %v186, %v191
    %v193 = vmul.f32 %v187, %v191
    %v194 = vmul.f32 %v188, %v191
    %v195 = vmul.f32 %v189, %v191
    %197 = vset.pattern.permute.xlu0 0
    %198 = vperm.xlu0 %197, %v148
    %v199 = vpop.permute.xlu0 %198
    %202 = vset.pattern.permute.xlu0 0
    %203 = vperm.xlu0 %202, %v149
    %v204 = vpop.permute.xlu0 %203
    %207 = vset.pattern.permute.xlu0 0
    %208 = vperm.xlu0 %207, %v150
    %v209 = vpop.permute.xlu0 %208
    %212 = vset.pattern.permute.xlu0 0
    %213 = vperm.xlu0 %212, %v151
    %v214 = vpop.permute.xlu0 %213
    %v216 = vmul.f32 %v192, %v199
    %v217 = vmul.f32 %v193, %v204
    %v218 = vmul.f32 %v194, %v209
    %v219 = vmul.f32 %v195, %v214
    %221 = vset.pattern.permute.xlu0 0
    %222 = vperm.xlu0 %221, %v152
    %v223 = vpop.permute.xlu0 %222
    %226 = vset.pattern.permute.xlu0 0
    %227 = vperm.xlu0 %226, %v153
    %v228 = vpop.permute.xlu0 %227
    %231 = vset.pattern.permute.xlu0 0
    %232 = vperm.xlu0 %231, %v154
    %v233 = vpop.permute.xlu0 %232
    %236 = vset.pattern.permute.xlu0 0
    %237 = vperm.xlu0 %236, %v155
    %v238 = vpop.permute.xlu0 %237
    %v240 = vadd.f32 %v216, %v223
    %v241 = vadd.f32 %v217, %v228
    %v242 = vadd.f32 %v218, %v233
    %v243 = vadd.f32 %v219, %v238
    %v244 = vmax.f32 %v240, 0.0
    %v245 = vmax.f32 %v241, 0.0
    %v246 = vmax.f32 %v242, 0.0
    %v247 = vmax.f32 %v243, 0.0
    %v248 = vadd.f32 %v244, %v245
    %v249 = vadd.f32 %v248, %v246
    %v250 = vadd.f32 %v249, %v247
    %v251 = vrot.slane %v250, 4
    %v252 = vadd.f32 %v250, %v251
    %v253 = vrot.slane %v252, 2
    %v254 = vadd.f32 %v252, %v253
    %v255 = vrot.slane %v254, 1
    %v256 = vadd.f32 %v254, %v255
    %v257 = vmul.f32 %v256, 0.03125
    %v258 = vmul.f32 %v244, %v244
    %v259 = vmul.f32 %v245, %v245
    %v260 = vmul.f32 %v246, %v246
    %v261 = vmul.f32 %v247, %v247
    %v262 = vadd.f32 %v258, %v259
    %v263 = vadd.f32 %v262, %v260
    %v264 = vadd.f32 %v263, %v261
    %v265 = vrot.slane %v264, 4
    %v266 = vadd.f32 %v264, %v265
    %v267 = vrot.slane %v266, 2
    %v268 = vadd.f32 %v266, %v267
    %v269 = vrot.slane %v268, 1
    %v270 = vadd.f32 %v268, %v269
    %v271 = vmul.f32 %v270, 0.03125
    %v272 = vmul.f32 %v257, %v257
    %v273 = vsub.f32 %v271, %v272
    %v274 = vsub.f32 %v244, %v257
    %v275 = vsub.f32 %v245, %v257
    %v276 = vsub.f32 %v246, %v257
    %v277 = vsub.f32 %v247, %v257
    %v278 = vadd.f32 %v273, 1e-05
    %v279 = vrsqrt.pop %v278
    %v280 = vmul.f32 %v274, %v279
    %v281 = vmul.f32 %v275, %v279
    %v282 = vmul.f32 %v276, %v279
    %v283 = vmul.f32 %v277, %v279
    %284 = vset.pattern.permute.xlu0 1
    %285 = vperm.xlu0 %284, %v148
    %v286 = vpop.permute.xlu0 %285
    %288 = vset.pattern.permute.xlu0 1
    %289 = vperm.xlu0 %288, %v149
    %v290 = vpop.permute.xlu0 %289
    %292 = vset.pattern.permute.xlu0 1
    %293 = vperm.xlu0 %292, %v150
    %v294 = vpop.permute.xlu0 %293
    %296 = vset.pattern.permute.xlu0 1
    %297 = vperm.xlu0 %296, %v151
    %v298 = vpop.permute.xlu0 %297
    %v300 = vmul.f32 %v280, %v286
    %v301 = vmul.f32 %v281, %v290
    %v302 = vmul.f32 %v282, %v294
    %v303 = vmul.f32 %v283, %v298
    %304 = vset.pattern.permute.xlu0 1
    %305 = vperm.xlu0 %304, %v152
    %v306 = vpop.permute.xlu0 %305
    %308 = vset.pattern.permute.xlu0 1
    %309 = vperm.xlu0 %308, %v153
    %v310 = vpop.permute.xlu0 %309
    %312 = vset.pattern.permute.xlu0 1
    %313 = vperm.xlu0 %312, %v154
    %v314 = vpop.permute.xlu0 %313
    %316 = vset.pattern.permute.xlu0 1
    %317 = vperm.xlu0 %316, %v155
    %v318 = vpop.permute.xlu0 %317
    %v320 = vadd.f32 %v300, %v306
    %v321 = vadd.f32 %v301, %v310
    %v322 = vadd.f32 %v302, %v314
    %v323 = vadd.f32 %v303, %v318
    %v324 = vld [vmem:[%s4] sm:$0xf]
    %v325 = vld [vmem:[%s4 + $0x4] sm:$0xf]
    %v326 = vld [vmem:[%s4 + $0x8] sm:$0xf]
    %v327 = vld [vmem:[%s4 + $0xc] sm:$0xf]
    %v328 = vld [vmem:[%s1] sm:$0xf]
    %v329 = vld [vmem:[%s5] sm:$0xff]
    %v330 = vld [vmem:[%s5 + $0x8] sm:$0xff]
    %v331 = vld [vmem:[%s5 + $0x10] sm:$0xff]
    %v332 = vld [vmem:[%s5 + $0x18] sm:$0xff]
    %334 = vset.pattern.permute.xlu0 0
    %335 = vperm.xlu0 %334, %v329
    %v336 = vpop.permute.xlu0 %335
    %339 = vset.pattern.permute.xlu0 0
    %340 = vperm.xlu0 %339, %v330
    %v341 = vpop.permute.xlu0 %340
    %344 = vset.pattern.permute.xlu0 0
    %345 = vperm.xlu0 %344, %v331
    %v346 = vpop.permute.xlu0 %345
    %349 = vset.pattern.permute.xlu0 0
    %350 = vperm.xlu0 %349, %v332
    %v351 = vpop.permute.xlu0 %350
    %v357 = vunpack.c.l.b16 %v324
    %v358 = vunpack.c.l.b16 %v325
    %v359 = vunpack.c.l.b16 %v326
    %v360 = vunpack.c.l.b16 %v327
    %v361 = vpack.c.b16 %v358, %v357
    %v362 = vpack.c.b16 %v360, %v359
    %vm363 = vcmask 64512
    %v365 = vsel %vm363, %v361, 0
    %v368 = vsel %vm363, %v362, 0
    %vm370 = vcmask 1043456
    %v372 = vsel %vm370, %v328, 0
    %374 = vmatprep.subr.bf16.mxu0 0
    %375 = vmatpush1.bf16.msra.mxu0 0
    %376 = vmatprep.subr.bf16.mxu0 0
    %377 = vmatpush1.bf16.msra.mxu0 0
    %378 = vmatprep.subr.bf16.mxu0 0
    %379 = vmatpush1.bf16.msra.mxu0 0
    %380 = vmatprep.subr.bf16.mxu0 0
    %381 = vmatpush1.bf16.msra.mxu0 0
    %382 = vmatprep.subr.bf16.mxu0 0
    %383 = vmatpush1.bf16.msra.mxu0 0
    %384 = vmatprep.subr.bf16.mxu0 0
    %385 = vmatpush1.bf16.msra.mxu0 0
    %386 = vmatprep.subr.bf16.mxu0 0
    %387 = vmatpush1.bf16.msra.mxu0 0
    %388 = vmatprep.subr.bf16.mxu0 0
    %389 = vmatpush1.bf16.msra.mxu0 %v372
    %390 = vmatprep.subr.bf16.mxu0 0
    %391 = vmatpush2.bf16.msra.mxu0 0
    %392 = vmatprep.subr.bf16.mxu0 0
    %393 = vmatpush2.bf16.msra.mxu0 0
    %394 = vmatprep.subr.bf16.mxu0 0
    %395 = vmatpush2.bf16.msra.mxu0 0
    %396 = vmatprep.subr.bf16.mxu0 0
    %397 = vmatpush2.bf16.msra.mxu0 0
    %398 = vmatprep.subr.bf16.mxu0 0
    %399 = vmatpush2.bf16.msra.mxu0 0
    %400 = vmatprep.subr.bf16.mxu0 0
    %401 = vmatpush2.bf16.msra.mxu0 0
    %402 = vmatprep.subr.bf16.mxu0 0
    %403 = vmatpush2.bf16.msra.mxu0 0
    %404 = vmatprep.subr.bf16.mxu0 0
    %405 = vmatpush2.bf16.msra.mxu0 0
    %406 = vmatprep.mubr.bf16.mxu0 0
    %407 = vmatmul.mubr.bf16.gmra.mxu0 %v365
    %v408 = vpop.f32.mrf.mxu0
    %v409 = vadd.f32 %v336, %v408
    %v410 = vpop.f32.mrf.mxu0
    %v411 = vpop.f32.mrf.mxu0
    %v412 = vadd.f32 %v341, %v411
    %v413 = vpop.f32.mrf.mxu0
    %414 = vmatprep.mubr.bf16.mxu0 0
    %415 = vmatmul.mubr.bf16.gmra.mxu0 %v368
    %v416 = vpop.f32.mrf.mxu0
    %v417 = vadd.f32 %v346, %v416
    %v418 = vpop.f32.mrf.mxu0
    %v419 = vpop.f32.mrf.mxu0
    %v420 = vadd.f32 %v351, %v419
    %v421 = vpop.f32.mrf.mxu0
    %422 = vdwg.mxu0
    %v423 = vld [vmem:[%s8] sm:$0xff]
    %v424 = vld [vmem:[%s8 + $0x8] sm:$0xff]
    %v425 = vld [vmem:[%s8 + $0x10] sm:$0xff]
    %v426 = vld [vmem:[%s8 + $0x18] sm:$0xff]
    %v427 = vld [vmem:[%s9] sm:$0xff]
    %v428 = vld [vmem:[%s9 + $0x8] sm:$0xff]
    %v429 = vld [vmem:[%s9 + $0x10] sm:$0xff]
    %v430 = vld [vmem:[%s9 + $0x18] sm:$0xff]
    %vm431 = vcmask 261120
    %v433 = vsel %vm431, %v427, 0
    %v436 = vsel %vm431, %v428, 0
    %v439 = vsel %vm431, %v429, 0
    %v442 = vsel %vm431, %v430, 0
    %444 = vmatprep.subr.mxu0 0.0
    %445 = vmatpush1.msra.mxu0 0.0
    %446 = vmatprep.subr.mxu0 0.0
    %447 = vmatpush1.msra.mxu0 0.0
    %448 = vmatprep.subr.mxu0 0.0
    %449 = vmatpush1.msra.mxu0 0.0
    %450 = vmatprep.subr.mxu0 0.0
    %451 = vmatpush1.msra.mxu0 0.0
    %452 = vmatprep.subr.mxu0 0.0
    %453 = vmatpush1.msra.mxu0 0.0
    %454 = vmatprep.subr.mxu0 0.0
    %455 = vmatpush1.msra.mxu0 0.0
    %456 = vmatprep.subr.mxu0 0.0
    %457 = vmatpush1.msra.mxu0 0.0
    %458 = vmatprep.subr.mxu0 0.0
    %459 = vmatpush1.msra.mxu0 0.0
    %460 = vmatprep.subr.mxu0 0.0
    %461 = vmatpush1.msra.mxu0 0.0
    %462 = vmatprep.subr.mxu0 0.0
    %463 = vmatpush1.msra.mxu0 0.0
    %464 = vmatprep.subr.mxu0 0.0
    %465 = vmatpush1.msra.mxu0 0.0
    %466 = vmatprep.subr.mxu0 0.0
    %467 = vmatpush1.msra.mxu0 0.0
    %468 = vmatprep.subr.mxu0 0.0
    %469 = vmatpush1.msra.mxu0 %v420
    %470 = vmatprep.subr.mxu0 0.0
    %471 = vmatpush1.msra.mxu0 %v417
    %472 = vmatprep.subr.mxu0 0.0
    %473 = vmatpush1.msra.mxu0 %v412
    %474 = vmatprep.subr.mxu0 0.0
    %475 = vmatpush1.msra.mxu0 %v409
    %476 = vmatprep.subr.mxu0 0.0
    %477 = vmatpush2.msra.mxu0 0.0
    %478 = vmatprep.subr.mxu0 0.0
    %479 = vmatpush2.msra.mxu0 0.0
    %480 = vmatprep.subr.mxu0 0.0
    %481 = vmatpush2.msra.mxu0 0.0
    %482 = vmatprep.subr.mxu0 0.0
    %483 = vmatpush2.msra.mxu0 0.0
    %484 = vmatprep.subr.mxu0 0.0
    %485 = vmatpush2.msra.mxu0 0.0
    %486 = vmatprep.subr.mxu0 0.0
    %487 = vmatpush2.msra.mxu0 0.0
    %488 = vmatprep.subr.mxu0 0.0
    %489 = vmatpush2.msra.mxu0 0.0
    %490 = vmatprep.subr.mxu0 0.0
    %491 = vmatpush2.msra.mxu0 0.0
    %492 = vmatprep.subr.mxu0 0.0
    %493 = vmatpush2.msra.mxu0 0.0
    %494 = vmatprep.subr.mxu0 0.0
    %495 = vmatpush2.msra.mxu0 0.0
    %496 = vmatprep.subr.mxu0 0.0
    %497 = vmatpush2.msra.mxu0 0.0
    %498 = vmatprep.subr.mxu0 0.0
    %499 = vmatpush2.msra.mxu0 0.0
    %500 = vmatprep.subr.mxu0 0.0
    %501 = vmatpush2.msra.mxu0 0.0
    %502 = vmatprep.subr.mxu0 0.0
    %503 = vmatpush2.msra.mxu0 0.0
    %504 = vmatprep.subr.mxu0 0.0
    %505 = vmatpush2.msra.mxu0 0.0
    %506 = vmatprep.subr.mxu0 0.0
    %507 = vmatpush2.msra.mxu0 0.0
    %508 = vmatprep.mubr.f32.mxu0 0.0
    %509 = vmatmul.mubr.f32.gmra.mxu0 %v433
    %v510 = vpop.f32.mrf.mxu0
    %v511 = vadd.f32 0.0, %v510
    %v512 = vpop.f32.mrf.mxu0
    %513 = vmatprep.mubr.f32.mxu0 0.0
    %514 = vmatmul.mubr.f32.gmra.mxu0 %v436
    %v515 = vpop.f32.mrf.mxu0
    %v516 = vadd.f32 0.0, %v515
    %v517 = vpop.f32.mrf.mxu0
    %518 = vmatprep.mubr.f32.mxu0 0.0
    %519 = vmatmul.mubr.f32.gmra.mxu0 %v439
    %v520 = vpop.f32.mrf.mxu0
    %v521 = vadd.f32 0.0, %v520
    %v522 = vpop.f32.mrf.mxu0
    %523 = vmatprep.mubr.f32.mxu0 0.0
    %524 = vmatmul.mubr.f32.gmra.mxu0 %v442
    %v525 = vpop.f32.mrf.mxu0
    %v526 = vadd.f32 0.0, %v525
    %v527 = vpop.f32.mrf.mxu0
    %528 = vdwg.mxu0
    %v530 = vsel %vm431, %v423, 0
    %v533 = vsel %vm431, %v424, 0
    %v536 = vsel %vm431, %v425, 0
    %v539 = vsel %vm431, %v426, 0
    %541 = vmatprep.subr.mxu0 0.0
    %542 = vmatpush1.msra.mxu0 0.0
    %543 = vmatprep.subr.mxu0 0.0
    %544 = vmatpush1.msra.mxu0 0.0
    %545 = vmatprep.subr.mxu0 0.0
    %546 = vmatpush1.msra.mxu0 0.0
    %547 = vmatprep.subr.mxu0 0.0
    %548 = vmatpush1.msra.mxu0 0.0
    %549 = vmatprep.subr.mxu0 0.0
    %550 = vmatpush1.msra.mxu0 0.0
    %551 = vmatprep.subr.mxu0 0.0
    %552 = vmatpush1.msra.mxu0 0.0
    %553 = vmatprep.subr.mxu0 0.0
    %554 = vmatpush1.msra.mxu0 0.0
    %555 = vmatprep.subr.mxu0 0.0
    %556 = vmatpush1.msra.mxu0 0.0
    %557 = vmatprep.subr.mxu0 0.0
    %558 = vmatpush1.msra.mxu0 0.0
    %559 = vmatprep.subr.mxu0 0.0
    %560 = vmatpush1.msra.mxu0 0.0
    %561 = vmatprep.subr.mxu0 0.0
    %562 = vmatpush1.msra.mxu0 0.0
    %563 = vmatprep.subr.mxu0 0.0
    %564 = vmatpush1.msra.mxu0 0.0
    %565 = vmatprep.subr.mxu0 0.0
    %566 = vmatpush1.msra.mxu0 %v323
    %567 = vmatprep.subr.mxu0 0.0
    %568 = vmatpush1.msra.mxu0 %v322
    %569 = vmatprep.subr.mxu0 0.0
    %570 = vmatpush1.msra.mxu0 %v321
    %571 = vmatprep.subr.mxu0 0.0
    %572 = vmatpush1.msra.mxu0 %v320
    %573 = vmatprep.subr.mxu0 0.0
    %574 = vmatpush2.msra.mxu0 0.0
    %575 = vmatprep.subr.mxu0 0.0
    %576 = vmatpush2.msra.mxu0 0.0
    %577 = vmatprep.subr.mxu0 0.0
    %578 = vmatpush2.msra.mxu0 0.0
    %579 = vmatprep.subr.mxu0 0.0
    %580 = vmatpush2.msra.mxu0 0.0
    %581 = vmatprep.subr.mxu0 0.0
    %582 = vmatpush2.msra.mxu0 0.0
    %583 = vmatprep.subr.mxu0 0.0
    %584 = vmatpush2.msra.mxu0 0.0
    %585 = vmatprep.subr.mxu0 0.0
    %586 = vmatpush2.msra.mxu0 0.0
    %587 = vmatprep.subr.mxu0 0.0
    %588 = vmatpush2.msra.mxu0 0.0
    %589 = vmatprep.subr.mxu0 0.0
    %590 = vmatpush2.msra.mxu0 0.0
    %591 = vmatprep.subr.mxu0 0.0
    %592 = vmatpush2.msra.mxu0 0.0
    %593 = vmatprep.subr.mxu0 0.0
    %594 = vmatpush2.msra.mxu0 0.0
    %595 = vmatprep.subr.mxu0 0.0
    %596 = vmatpush2.msra.mxu0 0.0
    %597 = vmatprep.subr.mxu0 0.0
    %598 = vmatpush2.msra.mxu0 0.0
    %599 = vmatprep.subr.mxu0 0.0
    %600 = vmatpush2.msra.mxu0 0.0
    %601 = vmatprep.subr.mxu0 0.0
    %602 = vmatpush2.msra.mxu0 0.0
    %603 = vmatprep.subr.mxu0 0.0
    %604 = vmatpush2.msra.mxu0 0.0
    %605 = vmatprep.mubr.f32.mxu0 0.0
    %606 = vmatmul.mubr.f32.gmra.mxu0 %v530
    %v607 = vpop.f32.mrf.mxu0
    %v608 = vadd.f32 %v511, %v607
    %v609 = vpop.f32.mrf.mxu0
    %610 = vmatprep.mubr.f32.mxu0 0.0
    %611 = vmatmul.mubr.f32.gmra.mxu0 %v533
    %v612 = vpop.f32.mrf.mxu0
    %v613 = vadd.f32 %v516, %v612
    %v614 = vpop.f32.mrf.mxu0
    %615 = vmatprep.mubr.f32.mxu0 0.0
    %616 = vmatmul.mubr.f32.gmra.mxu0 %v536
    %v617 = vpop.f32.mrf.mxu0
    %v618 = vadd.f32 %v521, %v617
    %v619 = vpop.f32.mrf.mxu0
    %620 = vmatprep.mubr.f32.mxu0 0.0
    %621 = vmatmul.mubr.f32.gmra.mxu0 %v539
    %v622 = vpop.f32.mrf.mxu0
    %v623 = vadd.f32 %v526, %v622
    %v624 = vpop.f32.mrf.mxu0
    %625 = vdwg.mxu0
    %v626 = vld [vmem:[%s10] sm:$0xff]
    %v627 = vld [vmem:[%s10 + $0x8] sm:$0xff]
    %v628 = vld [vmem:[%s10 + $0x10] sm:$0xff]
    %v629 = vld [vmem:[%s10 + $0x18] sm:$0xff]
    %631 = vset.pattern.permute.xlu0 0
    %632 = vperm.xlu0 %631, %v626
    %v633 = vpop.permute.xlu0 %632
    %636 = vset.pattern.permute.xlu0 0
    %637 = vperm.xlu0 %636, %v627
    %v638 = vpop.permute.xlu0 %637
    %641 = vset.pattern.permute.xlu0 0
    %642 = vperm.xlu0 %641, %v628
    %v643 = vpop.permute.xlu0 %642
    %646 = vset.pattern.permute.xlu0 0
    %647 = vperm.xlu0 %646, %v629
    %v648 = vpop.permute.xlu0 %647
    %v650 = vadd.f32 %v608, %v633
    %v651 = vadd.f32 %v613, %v638
    %v652 = vadd.f32 %v618, %v643
    %v653 = vadd.f32 %v623, %v648
    %v654 = vmax.f32 %v650, 0.0
    %v655 = vmax.f32 %v651, 0.0
    %v656 = vmax.f32 %v652, 0.0
    %v657 = vmax.f32 %v653, 0.0
    %v658 = vld [vmem:[%s11] sm:$0xff]
    %v659 = vld [vmem:[%s11 + $0x8] sm:$0xff]
    %v660 = vld [vmem:[%s12] sm:$0xff]
    %v661 = vld [vmem:[%s12 + $0x8] sm:$0xff]
    %663 = vset.pattern.permute.xlu0 0
    %664 = vperm.xlu0 %663, %v660
    %v665 = vpop.permute.xlu0 %664
    %668 = vset.pattern.permute.xlu0 0
    %669 = vperm.xlu0 %668, %v661
    %v670 = vpop.permute.xlu0 %669
    %v673 = vsel %vm431, %v658, 0
    %v676 = vsel %vm431, %v659, 0
    %678 = vmatprep.subr.mxu0 0.0
    %679 = vmatpush1.msra.mxu0 0.0
    %680 = vmatprep.subr.mxu0 0.0
    %681 = vmatpush1.msra.mxu0 0.0
    %682 = vmatprep.subr.mxu0 0.0
    %683 = vmatpush1.msra.mxu0 0.0
    %684 = vmatprep.subr.mxu0 0.0
    %685 = vmatpush1.msra.mxu0 0.0
    %686 = vmatprep.subr.mxu0 0.0
    %687 = vmatpush1.msra.mxu0 0.0
    %688 = vmatprep.subr.mxu0 0.0
    %689 = vmatpush1.msra.mxu0 0.0
    %690 = vmatprep.subr.mxu0 0.0
    %691 = vmatpush1.msra.mxu0 0.0
    %692 = vmatprep.subr.mxu0 0.0
    %693 = vmatpush1.msra.mxu0 0.0
    %694 = vmatprep.subr.mxu0 0.0
    %695 = vmatpush1.msra.mxu0 0.0
    %696 = vmatprep.subr.mxu0 0.0
    %697 = vmatpush1.msra.mxu0 0.0
    %698 = vmatprep.subr.mxu0 0.0
    %699 = vmatpush1.msra.mxu0 0.0
    %700 = vmatprep.subr.mxu0 0.0
    %701 = vmatpush1.msra.mxu0 0.0
    %702 = vmatprep.subr.mxu0 0.0
    %703 = vmatpush1.msra.mxu0 %v657
    %704 = vmatprep.subr.mxu0 0.0
    %705 = vmatpush1.msra.mxu0 %v656
    %706 = vmatprep.subr.mxu0 0.0
    %707 = vmatpush1.msra.mxu0 %v655
    %708 = vmatprep.subr.mxu0 0.0
    %709 = vmatpush1.msra.mxu0 %v654
    %710 = vmatprep.subr.mxu0 0.0
    %711 = vmatpush2.msra.mxu0 0.0
    %712 = vmatprep.subr.mxu0 0.0
    %713 = vmatpush2.msra.mxu0 0.0
    %714 = vmatprep.subr.mxu0 0.0
    %715 = vmatpush2.msra.mxu0 0.0
    %716 = vmatprep.subr.mxu0 0.0
    %717 = vmatpush2.msra.mxu0 0.0
    %718 = vmatprep.subr.mxu0 0.0
    %719 = vmatpush2.msra.mxu0 0.0
    %720 = vmatprep.subr.mxu0 0.0
    %721 = vmatpush2.msra.mxu0 0.0
    %722 = vmatprep.subr.mxu0 0.0
    %723 = vmatpush2.msra.mxu0 0.0
    %724 = vmatprep.subr.mxu0 0.0
    %725 = vmatpush2.msra.mxu0 0.0
    %726 = vmatprep.subr.mxu0 0.0
    %727 = vmatpush2.msra.mxu0 0.0
    %728 = vmatprep.subr.mxu0 0.0
    %729 = vmatpush2.msra.mxu0 0.0
    %730 = vmatprep.subr.mxu0 0.0
    %731 = vmatpush2.msra.mxu0 0.0
    %732 = vmatprep.subr.mxu0 0.0
    %733 = vmatpush2.msra.mxu0 0.0
    %734 = vmatprep.subr.mxu0 0.0
    %735 = vmatpush2.msra.mxu0 0.0
    %736 = vmatprep.subr.mxu0 0.0
    %737 = vmatpush2.msra.mxu0 0.0
    %738 = vmatprep.subr.mxu0 0.0
    %739 = vmatpush2.msra.mxu0 0.0
    %740 = vmatprep.subr.mxu0 0.0
    %741 = vmatpush2.msra.mxu0 0.0
    %742 = vmatprep.mubr.f32.mxu0 0.0
    %743 = vmatmul.mubr.f32.gmra.mxu0 %v673
    %v744 = vpop.f32.mrf.mxu0
    %v745 = vadd.f32 %v665, %v744
    %v746 = vpop.f32.mrf.mxu0
    %747 = vmatprep.mubr.f32.mxu0 0.0
    %748 = vmatmul.mubr.f32.gmra.mxu0 %v676
    %v749 = vpop.f32.mrf.mxu0
    %v750 = vadd.f32 %v670, %v749
    %v751 = vpop.f32.mrf.mxu0
    %752 = vdwg.mxu0
    %753 = vst [vmem:[#allocation2] sm:$0xff] %v745
    %754 = vst [vmem:[#allocation2 + $0x8] sm:$0xff] %v750
    // Predicated region
    $region54: #{tpu_custom_call.1} parent=1 // pred_check
      _
    $region55: #{tpu_custom_call.1} parent=1 // pred_check_branch
      %756 = sbr.rel (0) target = $region57
    $region56: #{tpu_custom_call.1} parent=1 // pred_region
      %s758 = ssub.s32 256, 256
      %759 = vsyncadd [#allocation3], %s758
      %s760 = sshll.u32 [#allocation2], 4
      %s761 = int_to_ptr.vmem [resolvable:$true] %s760
      %766 = dma.vmem_to_hbm [thread:$0]  %s761, 256, %s13, [#allocation3], 128, 128, 8
    $region57: #{tpu_custom_call.1} parent=1 // pred_fallthru
      _
    // Predicated region
    $region58: #{tpu_custom_call.1} parent=1 // pred_check
      _
    $region59: #{tpu_custom_call.1} parent=1 // pred_check_branch
      %768 = sbr.rel (0) target = $region61
    $region60: #{tpu_custom_call.1} parent=1 // pred_region
      %769 = dma.done [#allocation3], 256
    $region61: #{tpu_custom_call.1} parent=1 // pred_fallthru
      _
    %770 = vsyncpa [#allocation3], 1

</llo_original>
